<compile_context>
chip_gen: v5e
topology: v5e:2x2
jax: 0.10.0
libtpu: 0.0.40
codegen_flags: <defaults>
</compile_context>

<pallas_src>
import math

import jax
import jax.numpy as jnp
from jax import lax
from jax.experimental import pallas as pl
from jax.experimental.pallas import tpu as pltpu


def _round_up(x: int, m: int) -> int:
    return ((x + m - 1) // m) * m


def _mil_kernel(x_ref, w_ref, b_ref, pool_ref, inst_ref, bag_ref):
    # x_ref:    (TM, D)   bf16 row tile (Bb whole bags of instance embeddings)
    # w_ref:    (D, TG)   bf16 gene-predictor weight stripe (resident across rows)
    # b_ref:    (1, TG)   f32 bias stripe
    # pool_ref: (Bb, TM)  f32 per-bag mean pooling matrix (entries 1/N)
    # inst_ref: (TM, TG)  per-instance predictions (output)
    # bag_ref:  (Bb, TG)  per-bag predictions (output, sublane-dense)
    scores = jnp.dot(x_ref[...], w_ref[...],
                     preferred_element_type=jnp.float32)          # MXU, f32 acc
    scores = scores + b_ref[...]                                  # f32 VPU
    inst_ref[...] = scores.astype(inst_ref.dtype)

    # Fused bag mean: tiny (Bb, TM) @ (TM, TG) MXU dot instead of a second HBM pass.
    bag = jnp.dot(pool_ref[...], scores,
                  preferred_element_type=jnp.float32,
                  precision=lax.Precision.HIGHEST)
    bag_ref[...] = bag.astype(bag_ref.dtype)


def _tile_footprint(TM, TG, Bb, D, compute_bytes, out_bytes):
    # Double-buffered working set (inputs + outputs) for one grid step.
    return 2 * (TM * D * compute_bytes        # x tile
                + D * TG * compute_bytes      # weight stripe
                + TG * 4                      # bias stripe
                + Bb * TM * 4                 # pooling matrix
                + TM * TG * out_bytes         # instance-score tile
                + Bb * TG * out_bytes)        # bag-score tile


def _choose_tiles(B, N, D, G, compute_bytes, out_bytes, row_target, vmem_budget):
    # Gene stripe: lane multiple of 128, capped.
    TG = min(_round_up(G, 128), 2048)
    # Row tile = whole bags; target >= row_target rows per MXU call.
    Bb = max(1, row_target // max(N, 1))
    Bb = min(Bb, B)
    # Keep (Bb * N) a sublane multiple whenever the row tile does not cover all rows.
    step = 8 // math.gcd(N, 8)
    if Bb < B:
        Bb = min(_round_up(Bb, step), _round_up(B, step))
    TM = Bb * N

    while _tile_footprint(TM, TG, Bb, D, compute_bytes, out_bytes) > vmem_budget and TG > 128:
        TG -= 128
    while _tile_footprint(TM, TG, Bb, D, compute_bytes, out_bytes) > vmem_budget and Bb > step:
        Bb = max(step, Bb - step)
        TM = Bb * N
    return Bb, TM, TG


def base_mil_forward(x, w, b, *, compute_dtype=jnp.bfloat16, row_target=512,
                     bag_block=None, gene_block=None, vmem_budget=24 << 20):
    """Returns (bag_dict, instance_dict) mirroring BaseMilModel.forward.

    x: (B, N, D) instance embeddings, w: (D, G) gene predictor, b: (1, G) bias.
    """
    B, N, D = x.shape
    Dw, G = w.shape
    assert D == Dw
    b = jnp.asarray(b, jnp.float32).reshape(1, G)

    out_dtype = x.dtype
    compute_bytes = jnp.dtype(compute_dtype).itemsize
    out_bytes = jnp.dtype(out_dtype).itemsize

    Bb, TM, TG = _choose_tiles(B, N, D, G, compute_bytes, out_bytes,
                               row_target, vmem_budget)
    if bag_block is not None:
        Bb = int(bag_block)
        TM = Bb * N
    if gene_block is not None:
        TG = int(gene_block)

    B_pad = _round_up(B, Bb)
    G_pad = _round_up(G, TG)
    R = B_pad * N                       # total (padded) instance rows

    # Flatten rows, cast matmul operands to compute dtype, zero-pad fake bags /
    # extra gene columns (padded results are sliced off below).
    x2 = x.reshape(B * N, D).astype(compute_dtype)
    if B_pad != B:
        x2 = jnp.pad(x2, ((0, (B_pad - B) * N), (0, 0)))
    wc = w.astype(compute_dtype)
    bc = b
    if G_pad != G:
        wc = jnp.pad(wc, ((0, 0), (0, G_pad - G)))
        bc = jnp.pad(bc, ((0, 0), (0, G_pad - G)))

    # pool[p, r] = 1/N if row r of the tile belongs to bag p of the tile.
    row_bag = jnp.arange(TM, dtype=jnp.int32) // N
    pool = (row_bag[None, :] == jnp.arange(Bb, dtype=jnp.int32)[:, None])
    pool = pool.astype(jnp.float32) * (1.0 / N)

    grid = (G_pad // TG, R // TM)       # gene stripes OUTER -> W stripe resident

    footprint = _tile_footprint(TM, TG, Bb, D, compute_bytes, out_bytes)
    vmem_limit = int(min(64 << 20, max(16 << 20, 2 * footprint)))

    flops = 2 * R * D * G_pad + 2 * Bb * R * G_pad
    bytes_accessed = (x2.size * compute_bytes + wc.size * compute_bytes
                      + bc.size * 4 + pool.size * 4
                      + R * G_pad * out_bytes + B_pad * G_pad * out_bytes)

    inst2, bag = pl.pallas_call(
        _mil_kernel,
        out_shape=(jax.ShapeDtypeStruct((R, G_pad), out_dtype),
                   jax.ShapeDtypeStruct((B_pad, G_pad), out_dtype)),
        grid_spec=pltpu.PrefetchScalarGridSpec(
            num_scalar_prefetch=0,
            grid=grid,
            in_specs=[
                pl.BlockSpec((TM, D), lambda g, r: (r, 0)),     # x rows
                pl.BlockSpec((D, TG), lambda g, r: (0, g)),     # weight stripe (resident over r)
                pl.BlockSpec((1, TG), lambda g, r: (0, g)),     # bias stripe
                pl.BlockSpec((Bb, TM), lambda g, r: (0, 0)),    # pooling matrix (resident)
            ],
            out_specs=[
                pl.BlockSpec((TM, TG), lambda g, r: (r, g)),    # instance scores
                pl.BlockSpec((Bb, TG), lambda g, r: (r, g)),    # bag scores
            ],
        ),
        compiler_params=pltpu.CompilerParams(
            dimension_semantics=("parallel", "parallel"),
            vmem_limit_bytes=vmem_limit,
        ),
        cost_estimate=pl.CostEstimate(flops=int(flops), transcendentals=0,
                                      bytes_accessed=int(bytes_accessed)),
    )(x2, wc, bc, pool)

    inst = inst2[:B * N, :G].reshape(B, N, G)
    bag = bag[:B, :G]

    instance_dict = {"prediction": inst}     # (B, N, G)
    bag_dict = {"prediction": bag}           # (B, G)
    return bag_dict, instance_dict


def _reference_forward(x, w, b, compute_dtype):
    # Pure-JAX reference using the same operand quantization as the kernel.
    xc = x.astype(compute_dtype).astype(jnp.float32)
    wc = w.astype(compute_dtype).astype(jnp.float32)
    scores = jnp.einsum("bnd,dg->bng", xc, wc) + b.reshape(1, 1, -1)
    return scores.mean(axis=1), scores


def _run_case(key, B, N, D, G, **kwargs):
    kx, kw, kb = jax.random.split(key, 3)
    x = jax.random.normal(kx, (B, N, D), dtype=jnp.float32)
    w = jax.random.normal(kw, (D, G), dtype=jnp.float32) * 0.05
    bias = jax.random.normal(kb, (1, G), dtype=jnp.float32) * 0.01

    bag_dict, instance_dict = base_mil_forward(x, w, bias, **kwargs)
    jax.block_until_ready(bag_dict["prediction"])
    jax.block_until_ready(instance_dict["prediction"])

    bag_ref, inst_ref = _reference_forward(
        x, w, bias, kwargs.get("compute_dtype", jnp.bfloat16))

    assert instance_dict["prediction"].shape == (B, N, G)
    assert bag_dict["prediction"].shape == (B, G)
    assert jnp.allclose(instance_dict["prediction"], inst_ref, atol=5e-3, rtol=5e-3)
    assert jnp.allclose(bag_dict["prediction"], bag_ref, atol=5e-3, rtol=5e-3)


if __name__ == "__main__":
    key = jax.random.PRNGKey(0)
    k1, k2 = jax.random.split(key)

    # Case 1: the original toy shapes (2 bags, 8 instances, embed=32, genes=128).
    _run_case(k1, B=2, N=8, D=32, G=128)

    # Case 2: exercises the tiled path (multiple gene stripes and row tiles,
    # resident weight stripe, sublane-dense multi-bag output block).
    _run_case(k2, B=16, N=8, D=32, G=256, bag_block=8, gene_block=128)

    print("KERNEL_OK")
</pallas_src>

<mosaic_0001>
module attributes {stable_mosaic.version = 11 : i64} {
  func.func @_mil_kernel(%arg0: i32, %arg1: i32, %arg2: memref<16x32xbf16, #tpu.memory_space<vmem>>, %arg3: memref<32x128xbf16, #tpu.memory_space<vmem>>, %arg4: memref<1x128xf32, #tpu.memory_space<vmem>>, %arg5: memref<2x16xf32, #tpu.memory_space<vmem>>, %arg6: memref<16x128xf32, #tpu.memory_space<vmem>>, %arg7: memref<2x128xf32, #tpu.memory_space<vmem>>) attributes {dimension_semantics = [#tpu.dimension_semantics<parallel>, #tpu.dimension_semantics<parallel>], iteration_bounds = array<i64: 1, 1>, scalar_prefetch = 0 : i64, scratch_operands = 0 : i64, tpu.core_type = #tpu.core_type<tc>, window_params = [{transform_indices = @transform_0, window_bounds = array<i64: 16, 32>}, {transform_indices = @transform_1, window_bounds = array<i64: 32, 128>}, {transform_indices = @transform_2, window_bounds = array<i64: 1, 128>}, {pipeline_mode = #tpu.pipeline_mode<synchronous>, transform_indices = @transform_3, window_bounds = array<i64: 2, 16>}, {transform_indices = @transform_4, window_bounds = array<i64: 16, 128>}, {transform_indices = @transform_5, window_bounds = array<i64: 2, 128>}]} {
    %c0 = arith.constant 0 : index
    %c0_0 = arith.constant 0 : index
    %0 = vector.load %arg2[%c0, %c0_0] : memref<16x32xbf16, #tpu.memory_space<vmem>>, vector<16x32xbf16>
    %c0_1 = arith.constant 0 : index
    %c0_2 = arith.constant 0 : index
    %1 = vector.load %arg3[%c0_1, %c0_2] : memref<32x128xbf16, #tpu.memory_space<vmem>>, vector<32x128xbf16>
    %cst = arith.constant dense<0.000000e+00> : vector<16x128xf32>
    %2 = tpu.matmul %0, %1, %cst {dimension_numbers = #tpu.dot_dimension_numbers<[1], [0], [0], [1], [0, 0, 1, 1], [], []>} : vector<16x32xbf16>, vector<32x128xbf16>, vector<16x128xf32> -> vector<16x128xf32>
    %c0_3 = arith.constant 0 : index
    %c0_4 = arith.constant 0 : index
    %3 = vector.load %arg4[%c0_3, %c0_4] : memref<1x128xf32, #tpu.memory_space<vmem>>, vector<1x128xf32>
    %4 = vector.broadcast %3 : vector<1x128xf32> to vector<16x128xf32>
    %5 = arith.addf %2, %4 : vector<16x128xf32>
    %c0_5 = arith.constant 0 : index
    %c0_6 = arith.constant 0 : index
    %6 = vector.load %arg6[%c0_5, %c0_6] : memref<16x128xf32, #tpu.memory_space<vmem>>, vector<16x128xf32>
    tpu.vector_store %arg6[%c0_5, %c0_6], %5 {strides = array<i32>} : memref<16x128xf32, #tpu.memory_space<vmem>>, vector<16x128xf32>,
    %c0_7 = arith.constant 0 : index
    %c0_8 = arith.constant 0 : index
    %7 = vector.load %arg5[%c0_7, %c0_8] : memref<2x16xf32, #tpu.memory_space<vmem>>, vector<2x16xf32>
    %cst_9 = arith.constant dense<0.000000e+00> : vector<2x128xf32>
    %8 = tpu.matmul %7, %5, %cst_9 {dimension_numbers = #tpu.dot_dimension_numbers<[1], [0], [0], [1], [0, 0, 1, 1], [], []>, precision = #tpu.contract_precision<fp32>} : vector<2x16xf32>, vector<16x128xf32>, vector<2x128xf32> -> vector<2x128xf32>
    %c0_10 = arith.constant 0 : index
    %c0_11 = arith.constant 0 : index
    %9 = vector.load %arg7[%c0_10, %c0_11] : memref<2x128xf32, #tpu.memory_space<vmem>>, vector<2x128xf32>
    tpu.vector_store %arg7[%c0_10, %c0_11], %8 {strides = array<i32>} : memref<2x128xf32, #tpu.memory_space<vmem>>, vector<2x128xf32>,
    return
  }
  func.func @transform_0(%arg0: i32, %arg1: i32) -> (i32, i32) {
    %c0_i32 = arith.constant 0 : i32
    %c0_i32_0 = arith.constant 0 : i32
    return %arg1, %c0_i32 : i32, i32
  }
  func.func @transform_1(%arg0: i32, %arg1: i32) -> (i32, i32) {
    %c0_i32 = arith.constant 0 : i32
    %c0_i32_0 = arith.constant 0 : i32
    return %c0_i32, %arg0 : i32, i32
  }
  func.func @transform_2(%arg0: i32, %arg1: i32) -> (i32, i32) {
    %c0_i32 = arith.constant 0 : i32
    %c0_i32_0 = arith.constant 0 : i32
    return %c0_i32, %arg0 : i32, i32
  }
  func.func @transform_3(%arg0: i32, %arg1: i32) -> (i32, i32) {
    %c0_i32 = arith.constant 0 : i32
    %c0_i32_0 = arith.constant 0 : i32
    %c0_i32_1 = arith.constant 0 : i32
    return %c0_i32, %c0_i32_0 : i32, i32
  }
  func.func @transform_4(%arg0: i32, %arg1: i32) -> (i32, i32) {
    %c0_i32 = arith.constant 0 : i32
    return %arg1, %arg0 : i32, i32
  }
  func.func @transform_5(%arg0: i32, %arg1: i32) -> (i32, i32) {
    %c0_i32 = arith.constant 0 : i32
    return %arg1, %arg0 : i32, i32
  }
}

</mosaic_0001>

<llo_original>
// kernel: tpu_custom_call.1
$region0: #{tpu_custom_call.1}
  #allocation0 [shape = 'u32[]', space=smem, size = 0x4, offset = 0x4, fixed_abs, tag = 'smem constant byte address 0x4 - core index']
  #allocation1 [shape = 'u32[72,128]{1,0:T(1,128)}', space=vmem, size = 0x9000, scoped, tag = 'internal scratch']
  %s0 = inlined_call_operand.hbm [shape: bf16[16,32], index: 0, kind: input, shape index: {}]
  %s1 = inlined_call_operand.hbm [shape: bf16[32,128], index: 1, kind: input, shape index: {}]
  %s2 = inlined_call_operand.hbm [shape: f32[1,128], index: 2, kind: input, shape index: {}]
  %s3 = inlined_call_operand.vmem [shape: f32[2,16], index: 3, kind: input, shape index: {}]
  %s4 = inlined_call_operand.hbm [shape: f32[16,128], index: 4, kind: output, shape index: {0}]
  %s5 = inlined_call_operand.hbm [shape: f32[2,128], index: 5, kind: output, shape index: {1}]
  %6 = xla_tuple %s4, %s5
  %s7 = sld [smem:[#allocation0]]
  $region46: #{tpu_custom_call.1} parent=0
    _
  %s9 = ssub.s32 1, %s7
  %s10 = scalar_select 0, %s9, %s7
  $region1: #{tpu_custom_call.1} parent=0
    #allocation2 [shape = 'u8[4096]{0}', space=vmem, size = 0x1000, scoped, tag = 'input window, operand 0, single buffered']
    #allocation3 [shape = 's32[1]{0}', space=sflag, size = 0x4, scoped, tag = 'scoped memory for tpu_custom_call.1']
    #allocation4 [shape = 's32[1]{0}', space=sflag, size = 0x4, scoped, tag = 'scoped memory for tpu_custom_call.1']
    #allocation5 [shape = 'u8[8192]{0}', space=vmem, size = 0x2000, scoped, tag = 'input window, operand 1, single buffered']
    #allocation6 [shape = 's32[1]{0}', space=sflag, size = 0x4, scoped, tag = 'scoped memory for tpu_custom_call.1']
    #allocation7 [shape = 'u8[512]{0}', space=vmem, size = 0x400, scoped, tag = 'input window, operand 2, single buffered']
    #allocation8 [shape = 'u8[8192]{0}', space=vmem, size = 0x2000, scoped, tag = 'output window, operand 0, single buffered']
    #allocation9 [shape = 'u8[1024]{0}', space=vmem, size = 0x400, scoped, tag = 'output window, operand 1, single buffered']
    #allocation10 [shape = 's32[1]{0}', space=sflag, size = 0x4, scoped, tag = 'scoped memory for tpu_custom_call.1']
    %11 = vsyncpa [#allocation3], 0
    %12 = vsyncpa [#allocation6], 0
    %13 = vsyncpa [#allocation4], 0
    %14 = vsyncpa [#allocation10], 0
    // Predicated region
    $region2: #{tpu_custom_call.1} parent=1 // pred_check
      _
    $region3: #{tpu_custom_call.1} parent=1 // pred_check_branch
      %16 = sbr.rel (0) target = $region5
    $region4: #{tpu_custom_call.1} parent=1 // pred_region
      %18 = vsyncadd [#allocation3], 0
      %s19 = sshll.u32 %s0, 4
      %s20 = int_to_ptr.hbm [resolvable:$true] %s19
      %s21 = sshll.u32 [#allocation2], 4
      %s22 = int_to_ptr.vmem [resolvable:$true] %s21
      %27 = dma.hbm_to_vmem [thread:$0]  %s20, 128, %s22, [#allocation3], 64, 64, 4
    $region5: #{tpu_custom_call.1} parent=1 // pred_fallthru
      _
    // Predicated region
    $region6: #{tpu_custom_call.1} parent=1 // pred_check
      _
    $region7: #{tpu_custom_call.1} parent=1 // pred_check_branch
      %29 = sbr.rel (0) target = $region9
    $region8: #{tpu_custom_call.1} parent=1 // pred_region
      %31 = vsyncadd [#allocation6], 0
      %s32 = sshll.u32 %s1, 4
      %s33 = int_to_ptr.hbm [resolvable:$true] %s32
      %s34 = sshll.u32 [#allocation5], 4
      %s35 = int_to_ptr.vmem [resolvable:$true] %s34
      %40 = dma.hbm_to_vmem [thread:$0]  %s33, 256, %s35, [#allocation6], 64, 64, 4
    $region9: #{tpu_custom_call.1} parent=1 // pred_fallthru
      _
    // Predicated region
    $region10: #{tpu_custom_call.1} parent=1 // pred_check
      _
    $region11: #{tpu_custom_call.1} parent=1 // pred_check_branch
      %42 = sbr.rel (0) target = $region13
    $region12: #{tpu_custom_call.1} parent=1 // pred_region
      %44 = vsyncadd [#allocation6], 0
      %s46 = sshll.u32 %s2, 4
      %s47 = int_to_ptr.hbm [resolvable:$true] %s46
      %s48 = sshll.u32 [#allocation7], 4
      %s49 = int_to_ptr.vmem [resolvable:$true] %s48
      %51 = dma.hbm_to_vmem [thread:$0]  %s47, 16, %s49, [#allocation6]
    $region13: #{tpu_custom_call.1} parent=1 // pred_fallthru
      _
    // Predicated region
    $region14: #{tpu_custom_call.1} parent=1 // pred_check
      _
    $region15: #{tpu_custom_call.1} parent=1 // pred_check_branch
      %53 = sbr.rel (0) target = $region17
    $region16: #{tpu_custom_call.1} parent=1 // pred_region
      _
    $region17: #{tpu_custom_call.1} parent=1 // pred_fallthru
      _
    // Predicated region
    $region18: #{tpu_custom_call.1} parent=1 // pred_check
      _
    $region19: #{tpu_custom_call.1} parent=1 // pred_check_branch
      %55 = sbr.rel (0) target = $region21
    $region20: #{tpu_custom_call.1} parent=1 // pred_region
      %57 = dma.done [#allocation3], 128
    $region21: #{tpu_custom_call.1} parent=1 // pred_fallthru
      _
    // Predicated region
    $region22: #{tpu_custom_call.1} parent=1 // pred_check
      _
    $region23: #{tpu_custom_call.1} parent=1 // pred_check_branch
      %59 = sbr.rel (0) target = $region25
    $region24: #{tpu_custom_call.1} parent=1 // pred_region
      %61 = dma.done [#allocation6], 256
    $region25: #{tpu_custom_call.1} parent=1 // pred_fallthru
      _
    // Predicated region
    $region26: #{tpu_custom_call.1} parent=1 // pred_check
      _
    $region27: #{tpu_custom_call.1} parent=1 // pred_check_branch
      %63 = sbr.rel (0) target = $region29
    $region28: #{tpu_custom_call.1} parent=1 // pred_region
      %65 = dma.done [#allocation6], 16
    $region29: #{tpu_custom_call.1} parent=1 // pred_fallthru
      _
    %v67 = vld [vmem:[#allocation2] sm:$0xf]
    %v68 = vld [vmem:[#allocation2 + $0x4] sm:$0xf]
    %v69 = vld [vmem:[#allocation5] sm:$0xf]
    %v70 = vld [vmem:[#allocation5 + $0x4] sm:$0xf]
    %v71 = vld [vmem:[#allocation5 + $0x8] sm:$0xf]
    %v72 = vld [vmem:[#allocation5 + $0xc] sm:$0xf]
    %v73 = vld [vmem:[#allocation7] sm:$0x1]
    %v75 = vperm.slane %v73, 0
    %v79 = vunpack.c.l.b16 %v67
    %v80 = vunpack.c.l.b16 %v68
    %v81 = vpack.c.b16 %v80, %v79
    %v86 = vunpack.c.l.b16 %v69
    %v87 = vunpack.c.l.b16 %v70
    %v88 = vunpack.c.l.b16 %v71
    %v89 = vunpack.c.l.b16 %v72
    %v90 = vpack.c.b16 %v87, %v86
    %v91 = vpack.c.b16 %v89, %v88
    %vm94 = vcmask 261120
    %v96 = vsel %vm94, %v81, 0
    %98 = vmatpush.bf16.msra.mxu0 0
    %99 = vmatpush.bf16.msra.mxu0 0
    %100 = vmatpush.bf16.msra.mxu0 0
    %101 = vmatpush.bf16.msra.mxu0 0
    %102 = vmatpush.bf16.msra.mxu0 0
    %103 = vmatpush.bf16.msra.mxu0 0
    %104 = vmatpush.bf16.msra.mxu0 %v91
    %105 = vmatpush.bf16.msra.mxu0 %v90
    %106 = vmatmul.bf16.gmra.mxu0 %v96
    %v107 = vpop.f32.mrf.mxu0
    %v108 = vadd.f32 %v75, %v107
    %v109 = vpop.f32.mrf.mxu0
    %v110 = vadd.f32 %v75, %v109
    %111 = vdwg.mxu0
    %112 = vst [vmem:[#allocation8] sm:$0xff] %v108
    %113 = vst [vmem:[#allocation8 + $0x8] sm:$0xff] %v110
    %v114 = vld [vmem:[%s3] sm:$0x3]
    %vm115 = vcmask 130048
    %v117 = vsel %vm115, %v114, 0
    %119 = vmatpush.msra.mxu0 0.0
    %120 = vmatpush.msra.mxu0 0.0
    %121 = vmatpush.msra.mxu0 0.0
    %122 = vmatpush.msra.mxu0 0.0
    %123 = vmatpush.msra.mxu0 0.0
    %124 = vmatpush.msra.mxu0 0.0
    %125 = vmatpush.msra.mxu0 0.0
    %126 = vmatpush.msra.mxu0 0.0
    %127 = vmatpush.msra.mxu0 0.0
    %128 = vmatpush.msra.mxu0 0.0
    %129 = vmatpush.msra.mxu0 0.0
    %130 = vmatpush.msra.mxu0 0.0
    %131 = vmatpush.msra.mxu0 0.0
    %132 = vmatpush.msra.mxu0 0.0
    %v133 = vand.u32 %v110, 4294901760
    %134 = vmatpush.msra.mxu0 %v133
    %v135 = vand.u32 %v108, 4294901760
    %136 = vmatpush.msra.mxu0 %v135
    %v137 = vand.u32 %v117, 4294901760
    %v138 = vsub.f32 %v117, %v137
    %v139 = vand.u32 %v138, 4294901760
    %v140 = vsub.f32 %v138, %v139
    %v141 = vand.u32 %v140, 4294901760
    %142 = vmatmul.f32.gmra.mxu0 %v141
    %v143 = vpop.f32.mrf.mxu0
    %v144 = vadd.f32 0.0, %v143
    %145 = vdwg.mxu0
    %146 = vmatpush.msra.mxu0 0.0
    %147 = vmatpush.msra.mxu0 0.0
    %148 = vmatpush.msra.mxu0 0.0
    %149 = vmatpush.msra.mxu0 0.0
    %150 = vmatpush.msra.mxu0 0.0
    %151 = vmatpush.msra.mxu0 0.0
    %152 = vmatpush.msra.mxu0 0.0
    %153 = vmatpush.msra.mxu0 0.0
    %154 = vmatpush.msra.mxu0 0.0
    %155 = vmatpush.msra.mxu0 0.0
    %156 = vmatpush.msra.mxu0 0.0
    %157 = vmatpush.msra.mxu0 0.0
    %158 = vmatpush.msra.mxu0 0.0
    %159 = vmatpush.msra.mxu0 0.0
    %v160 = vand.u32 %v110, 4294901760
    %v161 = vsub.f32 %v110, %v160
    %v162 = vand.u32 %v161, 4294901760
    %v163 = vsub.f32 %v161, %v162
    %v164 = vand.u32 %v163, 4294901760
    %165 = vmatpush.msra.mxu0 %v164
    %v166 = vand.u32 %v108, 4294901760
    %v167 = vsub.f32 %v108, %v166
    %v168 = vand.u32 %v167, 4294901760
    %v169 = vsub.f32 %v167, %v168
    %v170 = vand.u32 %v169, 4294901760
    %171 = vmatpush.msra.mxu0 %v170
    %v172 = vand.u32 %v117, 4294901760
    %173 = vmatmul.f32.gmra.mxu0 %v172
    %v174 = vpop.f32.mrf.mxu0
    %v175 = vadd.f32 %v144, %v174
    %176 = vdwg.mxu0
    %177 = vmatpush.msra.mxu0 0.0
    %178 = vmatpush.msra.mxu0 0.0
    %179 = vmatpush.msra.mxu0 0.0
    %180 = vmatpush.msra.mxu0 0.0
    %181 = vmatpush.msra.mxu0 0.0
    %182 = vmatpush.msra.mxu0 0.0
    %183 = vmatpush.msra.mxu0 0.0
    %184 = vmatpush.msra.mxu0 0.0
    %185 = vmatpush.msra.mxu0 0.0
    %186 = vmatpush.msra.mxu0 0.0
    %187 = vmatpush.msra.mxu0 0.0
    %188 = vmatpush.msra.mxu0 0.0
    %189 = vmatpush.msra.mxu0 0.0
    %190 = vmatpush.msra.mxu0 0.0
    %v191 = vand.u32 %v110, 4294901760
    %v192 = vsub.f32 %v110, %v191
    %193 = vmatpush.msra.mxu0 %v192
    %v194 = vand.u32 %v108, 4294901760
    %v195 = vsub.f32 %v108, %v194
    %196 = vmatpush.msra.mxu0 %v195
    %v197 = vand.u32 %v117, 4294901760
    %v198 = vsub.f32 %v117, %v197
    %199 = vmatmul.f32.gmra.mxu0 %v198
    %v200 = vpop.f32.mrf.mxu0
    %v201 = vadd.f32 %v175, %v200
    %202 = vdwg.mxu0
    %203 = vmatpush.msra.mxu0 0.0
    %204 = vmatpush.msra.mxu0 0.0
    %205 = vmatpush.msra.mxu0 0.0
    %206 = vmatpush.msra.mxu0 0.0
    %207 = vmatpush.msra.mxu0 0.0
    %208 = vmatpush.msra.mxu0 0.0
    %209 = vmatpush.msra.mxu0 0.0
    %210 = vmatpush.msra.mxu0 0.0
    %211 = vmatpush.msra.mxu0 0.0
    %212 = vmatpush.msra.mxu0 0.0
    %213 = vmatpush.msra.mxu0 0.0
    %214 = vmatpush.msra.mxu0 0.0
    %215 = vmatpush.msra.mxu0 0.0
    %216 = vmatpush.msra.mxu0 0.0
    %v217 = vand.u32 %v110, 4294901760
    %218 = vmatpush.msra.mxu0 %v217
    %v219 = vand.u32 %v108, 4294901760
    %220 = vmatpush.msra.mxu0 %v219
    %v221 = vand.u32 %v117, 4294901760
    %v222 = vsub.f32 %v117, %v221
    %v223 = vand.u32 %v222, 4294901760
    %224 = vmatmul.f32.gmra.mxu0 %v223
    %v225 = vpop.f32.mrf.mxu0
    %v226 = vadd.f32 %v201, %v225
    %227 = vdwg.mxu0
    %228 = vmatpush.msra.mxu0 0.0
    %229 = vmatpush.msra.mxu0 0.0
    %230 = vmatpush.msra.mxu0 0.0
    %231 = vmatpush.msra.mxu0 0.0
    %232 = vmatpush.msra.mxu0 0.0
    %233 = vmatpush.msra.mxu0 0.0
    %234 = vmatpush.msra.mxu0 0.0
    %235 = vmatpush.msra.mxu0 0.0
    %236 = vmatpush.msra.mxu0 0.0
    %237 = vmatpush.msra.mxu0 0.0
    %238 = vmatpush.msra.mxu0 0.0
    %239 = vmatpush.msra.mxu0 0.0
    %240 = vmatpush.msra.mxu0 0.0
    %241 = vmatpush.msra.mxu0 0.0
    %v242 = vand.u32 %v110, 4294901760
    %v243 = vsub.f32 %v110, %v242
    %v244 = vand.u32 %v243, 4294901760
    %245 = vmatpush.msra.mxu0 %v244
    %v246 = vand.u32 %v108, 4294901760
    %v247 = vsub.f32 %v108, %v246
    %v248 = vand.u32 %v247, 4294901760
    %249 = vmatpush.msra.mxu0 %v248
    %v250 = vand.u32 %v117, 4294901760
    %251 = vmatmul.f32.gmra.mxu0 %v250
    %v252 = vpop.f32.mrf.mxu0
    %v253 = vadd.f32 %v226, %v252
    %254 = vdwg.mxu0
    %255 = vmatpush.msra.mxu0 0.0
    %256 = vmatpush.msra.mxu0 0.0
    %257 = vmatpush.msra.mxu0 0.0
    %258 = vmatpush.msra.mxu0 0.0
    %259 = vmatpush.msra.mxu0 0.0
    %260 = vmatpush.msra.mxu0 0.0
    %261 = vmatpush.msra.mxu0 0.0
    %262 = vmatpush.msra.mxu0 0.0
    %263 = vmatpush.msra.mxu0 0.0
    %264 = vmatpush.msra.mxu0 0.0
    %265 = vmatpush.msra.mxu0 0.0
    %266 = vmatpush.msra.mxu0 0.0
    %267 = vmatpush.msra.mxu0 0.0
    %268 = vmatpush.msra.mxu0 0.0
    %v269 = vand.u32 %v110, 4294901760
    %270 = vmatpush.msra.mxu0 %v269
    %v271 = vand.u32 %v108, 4294901760
    %272 = vmatpush.msra.mxu0 %v271
    %v273 = vand.u32 %v117, 4294901760
    %274 = vmatmul.f32.gmra.mxu0 %v273
    %v275 = vpop.f32.mrf.mxu0
    %v276 = vadd.f32 %v253, %v275
    %277 = vdwg.mxu0
    %278 = vst [vmem:[#allocation9] sm:$0x3] %v276
    // Predicated region
    $region30: #{tpu_custom_call.1} parent=1 // pred_check
      _
    $region31: #{tpu_custom_call.1} parent=1 // pred_check_branch
      %280 = sbr.rel (0) target = $region33
    $region32: #{tpu_custom_call.1} parent=1 // pred_region
      %282 = vsyncadd [#allocation4], 0
      %s283 = sshll.u32 [#allocation8], 4
      %s284 = int_to_ptr.vmem [resolvable:$true] %s283
      %s285 = sshll.u32 %s4, 4
      %s286 = int_to_ptr.hbm [resolvable:$true] %s285
      %291 = dma.vmem_to_hbm [thread:$0]  %s284, 256, %s286, [#allocation4], 128, 128, 8
    $region33: #{tpu_custom_call.1} parent=1 // pred_fallthru
      _
    // Predicated region
    $region34: #{tpu_custom_call.1} parent=1 // pred_check
      _
    $region35: #{tpu_custom_call.1} parent=1 // pred_check_branch
      %293 = sbr.rel (0) target = $region37
    $region36: #{tpu_custom_call.1} parent=1 // pred_region
      %295 = vsyncadd [#allocation10], 0
      %s297 = sshll.u32 [#allocation9], 4
      %s298 = int_to_ptr.vmem [resolvable:$true] %s297
      %s299 = sshll.u32 %s5, 4
      %s300 = int_to_ptr.hbm [resolvable:$true] %s299
      %302 = dma.vmem_to_hbm [thread:$0]  %s298, 32, %s300, [#allocation10]
    $region37: #{tpu_custom_call.1} parent=1 // pred_fallthru
      _
    // Predicated region
    $region38: #{tpu_custom_call.1} parent=1 // pred_check
      _
    $region39: #{tpu_custom_call.1} parent=1 // pred_check_branch
      %304 = sbr.rel (0) target = $region41
    $region40: #{tpu_custom_call.1} parent=1 // pred_region
      %306 = dma.done [#allocation4], 256
    $region41: #{tpu_custom_call.1} parent=1 // pred_fallthru
      _
    // Predicated region
    $region42: #{tpu_custom_call.1} parent=1 // pred_check
      _
    $region43: #{tpu_custom_call.1} parent=1 // pred_check_branch
      %308 = sbr.rel (0) target = $region45
    $region44: #{tpu_custom_call.1} parent=1 // pred_region
      %310 = dma.done [#allocation10], 32
    $region45: #{tpu_custom_call.1} parent=1 // pred_fallthru
      _
    %311 = vsyncpa [#allocation3], 1
    %312 = vsyncpa [#allocation6], 1
    %313 = vsyncpa [#allocation4], 1
    %314 = vsyncpa [#allocation10], 1

</llo_original>
